<compile_context>
chip_gen: v7x
topology: tpu7x:2x2x1
jax: 0.10.0
libtpu: 0.0.40
codegen_flags: <defaults>
</compile_context>

<pallas_src>
import math
import jax
import jax.numpy as jnp
from jax import lax
from jax.experimental import pallas as pl
from jax.experimental.pallas import tpu as pltpu

OUT_FEATURES_ATT = 64  # AttentionFilter.out_features
LANE = 128


def _round_up(x, m):
    return ((x + m - 1) // m) * m


def cendgcnn_kernel(x_ref, xs_ref, e_ref, adj_ref,
                    v1_ref, v2t_ref, weff_ref, bias_ref, scal_ref,
                    xupd_ref, eupd_ref):
    P, N, _ = e_ref.shape
    C = weff_ref.shape[1]
    out_pad = xupd_ref.shape[1]          # lane-dense padded output width (>= P*C)

    X = x_ref[...]          # [N, F]
    Xs = xs_ref[...]        # [3N, F]  == [X; X_l1; X_0]
    adj = adj_ref[...]      # [N, N]
    E_all = e_ref[...]      # [P, N, N]

    # ---------------- AttentionFilter (W_att folded into v1 / v2t) ----------------
    # Wh1 = X W a1 = X (W a1) = X v1 ;  Wh2.T = (X W a2).T = v2t X.T  (no [N,64] intermediate).
    Wh1 = jnp.dot(X, v1_ref[...], preferred_element_type=jnp.float32)        # [N, 1]
    Wh2_row = lax.dot_general(v2t_ref[...], X,
                              dimension_numbers=(((1,), (1,)), ((), ())),
                              preferred_element_type=jnp.float32)            # [1, N]
    e = Wh1 + Wh2_row                                                        # [N, N]
    e = jnp.where(e > 0, e, 0.01 * e)                                        # LeakyReLU (default slope)
    logits = jnp.where(adj > 0, e, jnp.float32(-9e15))
    m = jnp.max(logits, axis=1, keepdims=True)
    p = jnp.exp(logits - m)
    att = p * pl.reciprocal(jnp.sum(p, axis=1, keepdims=True), approx=True)  # softmax over dim=1

    # ---------------- GCNLayer supports: one stacked matmul ----------------
    zeta = scal_ref[0]
    eta = scal_ref[1]
    theta = scal_ref[2]
    # g_l is pre-folded into W_eff = (1-delta)*eye(F,C) + delta*W in the wrapper.
    supports = jnp.dot(Xs, weff_ref[...], preferred_element_type=jnp.float32)  # [3N, C]
    support0 = supports[0 * N:1 * N, :]   # g_l(X)
    support1 = supports[1 * N:2 * N, :]   # g_l(X_l1)
    support2 = supports[2 * N:3 * N, :]   # g_l(X_0)

    # ---------------- attended edges (computed once, reused by GCN + DSN) ----------------
    Em_all = att[None, :, :] * E_all                                         # [P, N, N] f32

    # P narrow [N,N] @ [N,C] matmuls batched into a single [P*N, N] @ [N, C] (kept f32: tiny,
    # and bf16 here risks cancellation error in X_upd; see header note).
    sup_all = jnp.dot(Em_all.reshape(P * N, N), support0,
                      preferred_element_type=jnp.float32).reshape(P, N, C)
    res = zeta * sup_all + eta * support1[None] + theta * support2[None]     # [P, N, C]

    # output = out_tensor.transpose(2,1).reshape(-1, P*C): channel c -> cols [c*C,(c+1)*C).
    # Assemble the padded [N, out_pad] slab and store it ONCE, lane-dense (no vst.msk).
    cols = [res[c] for c in range(P)]
    if out_pad > P * C:
        cols.append(jnp.zeros((N, out_pad - P * C), jnp.float32))
    xupd_ref[...] = jnp.concatenate(cols, axis=1) + bias_ref[...]

    # ---------------- E update: DSN(att * E), batched over channels ----------------
    # torch dim=1 (over j) == last axis here; torch dim=0 (over i) == middle axis.
    inv_row = pl.reciprocal(jnp.sum(Em_all, axis=2, keepdims=True) + 1e-16, approx=True)
    E1 = Em_all * inv_row                                                    # [P, N, N]
    inv_col = pl.reciprocal(jnp.sum(E1, axis=1, keepdims=True) + 1e-16, approx=True)
    Fc = E1 * inv_col                                                        # [P, N, N]
    # einsum('ijp,kjp->ikp') == batched contraction of the LAST axes; bf16 operands feed the
    # MXU natively on v6e/v7x, f32 accumulation keeps the 2e-2 tolerance comfortably
    # (E1/Fc are non-negative, so the error is purely relative, ~0.4%).
    eupd_ref[...] = lax.dot_general(E1.astype(jnp.bfloat16), Fc.astype(jnp.bfloat16),
                                    dimension_numbers=(((2,), (2,)), ((0,), (0,))),
                                    preferred_element_type=jnp.float32)      # [P, N, N]


def _vmem_budget_bytes(N, Fdim, P, C, out_pad):
    """Scoped VMEM request derived from the actual resident footprint (not a blanket 64 MiB)."""
    f32 = 4
    resident = f32 * (
        4 * N * Fdim                      # X + Xs
        + 4 * N * N                       # adj + attention temporaries
        + N * out_pad                     # padded X_upd output
        + 6 * P * N * N                   # E in, E_upd out, Em_all, E1, Fc (+ bf16 copies)
        + 4 * Fdim * max(C, OUT_FEATURES_ATT)  # small weights / slack
    )
    # 2x headroom for compiler scratch, clamped so we never claim all of v7x's 64 MiB VMEM.
    return int(min(max(2 * resident, 8 << 20), 48 << 20))


def cendgcnn_forward_pnn(X, E_pnn, X0, Xl1, edge_list, params, num_layer, lamb=0.5):
    """Channel-major layer: E_pnn is [P, N, N] in and out (preferred for chaining layers)."""
    N, Fdim = X.shape
    P = E_pnn.shape[0]
    C = params["gcn_weight"].shape[1]
    out_pad = max(LANE, _round_up(P * C, LANE))

    # --- glue: adjacency from edge_list (dynamic scatter; stays in plain JAX) ---
    adj = jnp.zeros((N, N), jnp.float32)
    adj = adj.at[edge_list[0], edge_list[1]].set(1.0)
    adj = adj.at[edge_list[1], edge_list[0]].set(1.0)

    # --- glue: fold g_l into one effective weight ---
    delta = math.log(lamb / num_layer + 1.0)
    eye_fc = jnp.eye(Fdim, C, dtype=jnp.float32)
    W_eff = (1.0 - delta) * eye_fc + delta * params["gcn_weight"].astype(jnp.float32)

    # --- glue: fold W_att out of the kernel ---
    a = params["a"].astype(jnp.float32)
    W_att = params["W_att"].astype(jnp.float32)
    v1 = W_att @ a[:OUT_FEATURES_ATT]                 # [F, 1]
    v2t = (W_att @ a[OUT_FEATURES_ATT:]).T            # [1, F]

    scal = jnp.stack([params["zeta"], params["eta"], params["theta"]]).astype(jnp.float32)
    bias_pad = jnp.zeros((1, out_pad), jnp.float32).at[0, :P * C].set(
        params["bias"].astype(jnp.float32))
    Xf = X.astype(jnp.float32)
    Xs = jnp.concatenate([Xf, Xl1.astype(jnp.float32), X0.astype(jnp.float32)], axis=0)  # [3N, F]

    vm = pl.BlockSpec(memory_space=pltpu.MemorySpace.VMEM)
    sm = pl.BlockSpec(memory_space=pltpu.MemorySpace.SMEM)

    xupd_pad, eupd_pnn = pl.pallas_call(
        cendgcnn_kernel,
        out_shape=(jax.ShapeDtypeStruct((N, out_pad), jnp.float32),
                   jax.ShapeDtypeStruct((P, N, N), jnp.float32)),
        in_specs=[vm] * 8 + [sm],
        out_specs=(vm, vm),
        compiler_params=pltpu.CompilerParams(
            vmem_limit_bytes=_vmem_budget_bytes(N, Fdim, P, C, out_pad)),
    )(Xf, Xs, E_pnn.astype(jnp.float32), adj, v1, v2t, W_eff, bias_pad, scal)

    return xupd_pad[:, :P * C], eupd_pnn


def cendgcnn_forward(X, E, X0, Xl1, edge_list, params, num_layer, lamb=0.5):
    """PyTorch-convention wrapper: E is [N, N, P] in and out (layout converted at the boundary)."""
    E_pnn = jnp.transpose(E, (2, 0, 1))
    xupd, eupd_pnn = cendgcnn_forward_pnn(X, E_pnn, X0, Xl1, edge_list, params, num_layer, lamb)
    return xupd, jnp.transpose(eupd_pnn, (1, 2, 0))


# -------------------- pure-JAX reference (for verification) --------------------
def reference_forward(X, E, X0, Xl1, edge_list, params, num_layer, lamb=0.5):
    N, Fdim = X.shape
    P = E.shape[2]
    C = params["gcn_weight"].shape[1]
    adj = jnp.zeros((N, N), jnp.float32)
    adj = adj.at[edge_list[0], edge_list[1]].set(1.0)
    adj = adj.at[edge_list[1], edge_list[0]].set(1.0)

    Wh = X @ params["W_att"]
    Wh1 = Wh @ params["a"][:OUT_FEATURES_ATT]
    Wh2 = Wh @ params["a"][OUT_FEATURES_ATT:]
    e = Wh1 + Wh2.T
    e = jnp.where(e > 0, e, 0.01 * e)
    att = jnp.where(adj > 0, e, jnp.float32(-9e15))
    att = jax.nn.softmax(att, axis=1)

    delta = math.log(lamb / num_layer + 1.0)
    eye_fc = jnp.eye(Fdim, C, dtype=jnp.float32)

    def g(x):
        return (1.0 - delta) * (x @ eye_fc) + delta * (x @ params["gcn_weight"])

    s0, s1, s2 = g(X), g(Xl1), g(X0)
    outs = []
    for c in range(P):
        sup = (att * E[:, :, c]) @ s0
        outs.append(params["zeta"] * sup + params["eta"] * s1 + params["theta"] * s2)
    out_tensor = jnp.stack(outs, axis=-1)                       # [N, C, P]
    output = jnp.transpose(out_tensor, (0, 2, 1)).reshape(N, P * C) + params["bias"]

    Em = att[:, :, None] * E
    E1 = Em / (jnp.sum(Em, axis=1, keepdims=True) + 1e-16)
    Fc = E1 / (jnp.sum(E1, axis=0, keepdims=True) + 1e-16)
    E_norm = jnp.einsum("ijp,kjp->ikp", E1, Fc)
    return output, E_norm


def xavier_uniform(key, shape, gain=1.0):
    fan_in, fan_out = shape[0], shape[1]
    bound = gain * math.sqrt(6.0 / (fan_in + fan_out))
    return jax.random.uniform(key, shape, jnp.float32, -bound, bound)


if __name__ == "__main__":
    # Small shapes consistent with the module
    N, Fdim, C, P, NUM_LAYER, NUM_EDGES = 16, 32, 8, 3, 2, 20

    key = jax.random.PRNGKey(0)
    ks = jax.random.split(key, 12)

    X = jax.random.normal(ks[0], (N, Fdim), jnp.float32)
    X0 = jax.random.normal(ks[1], (N, Fdim), jnp.float32)
    Xl1 = jax.random.normal(ks[2], (N, Fdim), jnp.float32)
    E = jax.random.uniform(ks[3], (N, N, P), jnp.float32)
    edge_list = jax.random.randint(ks[4], (2, NUM_EDGES), 0, N, jnp.int32)

    params = {
        "W_att": xavier_uniform(ks[5], (Fdim, OUT_FEATURES_ATT), gain=1.414),
        "a": xavier_uniform(ks[6], (2 * OUT_FEATURES_ATT, 1), gain=1.414),
        "gcn_weight": xavier_uniform(ks[7], (Fdim, C), gain=1.0),
        "zeta": jax.random.uniform(ks[8], (), jnp.float32),
        "eta": jax.random.uniform(ks[9], (), jnp.float32),
        "theta": jax.random.uniform(ks[10], (), jnp.float32),
        "bias": jnp.zeros((P * C,), jnp.float32),
    }

    X_upd, E_upd = cendgcnn_forward(X, E, X0, Xl1, edge_list, params, NUM_LAYER)
    jax.block_until_ready((X_upd, E_upd))

    X_ref, E_ref = reference_forward(X, E, X0, Xl1, edge_list, params, NUM_LAYER)
    assert X_upd.shape == (N, P * C) and E_upd.shape == (N, N, P)
    assert jnp.allclose(X_upd, X_ref, rtol=2e-2, atol=2e-3), "X_upd mismatch"
    assert jnp.allclose(E_upd, E_ref, rtol=2e-2, atol=2e-3), "E_upd mismatch"

    print("KERNEL_OK")
</pallas_src>

<mosaic_0001>
module attributes {stable_mosaic.version = 11 : i64} {
  func.func @cendgcnn_kernel(%arg0: memref<16x32xf32, #tpu.memory_space<vmem>>, %arg1: memref<48x32xf32, #tpu.memory_space<vmem>>, %arg2: memref<3x16x16xf32, #tpu.memory_space<vmem>>, %arg3: memref<16x16xf32, #tpu.memory_space<vmem>>, %arg4: memref<32x1xf32, #tpu.memory_space<vmem>>, %arg5: memref<1x32xf32, #tpu.memory_space<vmem>>, %arg6: memref<32x8xf32, #tpu.memory_space<vmem>>, %arg7: memref<1x128xf32, #tpu.memory_space<vmem>>, %arg8: memref<3xf32, #tpu.memory_space<smem>>, %arg9: memref<16x128xf32, #tpu.memory_space<vmem>>, %arg10: memref<3x16x16xf32, #tpu.memory_space<vmem>>) attributes {dimension_semantics = [], scalar_prefetch = 0 : i64, scratch_operands = 0 : i64, tpu.core_type = #tpu.core_type<tc>} {
    %c0 = arith.constant 0 : index
    %c0_0 = arith.constant 0 : index
    %0 = vector.load %arg0[%c0, %c0_0] : memref<16x32xf32, #tpu.memory_space<vmem>>, vector<16x32xf32>
    %c0_1 = arith.constant 0 : index
    %c0_2 = arith.constant 0 : index
    %1 = vector.load %arg1[%c0_1, %c0_2] : memref<48x32xf32, #tpu.memory_space<vmem>>, vector<48x32xf32>
    %c0_3 = arith.constant 0 : index
    %c0_4 = arith.constant 0 : index
    %2 = vector.load %arg3[%c0_3, %c0_4] : memref<16x16xf32, #tpu.memory_space<vmem>>, vector<16x16xf32>
    %c0_5 = arith.constant 0 : index
    %c0_6 = arith.constant 0 : index
    %c0_7 = arith.constant 0 : index
    %3 = vector.load %arg2[%c0_5, %c0_6, %c0_7] : memref<3x16x16xf32, #tpu.memory_space<vmem>>, vector<3x16x16xf32>
    %c0_8 = arith.constant 0 : index
    %c0_9 = arith.constant 0 : index
    %4 = vector.load %arg4[%c0_8, %c0_9] : memref<32x1xf32, #tpu.memory_space<vmem>>, vector<32x1xf32>
    %cst = arith.constant dense<0.000000e+00> : vector<16x1xf32>
    %5 = tpu.matmul %0, %4, %cst {dimension_numbers = #tpu.dot_dimension_numbers<[1], [0], [0], [1], [0, 0, 1, 1], [], []>} : vector<16x32xf32>, vector<32x1xf32>, vector<16x1xf32> -> vector<16x1xf32>
    %c0_10 = arith.constant 0 : index
    %c0_11 = arith.constant 0 : index
    %6 = vector.load %arg5[%c0_10, %c0_11] : memref<1x32xf32, #tpu.memory_space<vmem>>, vector<1x32xf32>
    %cst_12 = arith.constant dense<0.000000e+00> : vector<1x16xf32>
    %7 = tpu.matmul %6, %0, %cst_12 {dimension_numbers = #tpu.dot_dimension_numbers<[1], [1], [0], [0], [0, 0, 1, 0], [], []>} : vector<1x32xf32>, vector<16x32xf32>, vector<1x16xf32> -> vector<1x16xf32>
    %8 = vector.broadcast %5 : vector<16x1xf32> to vector<16x16xf32>
    %9 = vector.broadcast %7 : vector<1x16xf32> to vector<16x16xf32>
    %10 = arith.addf %8, %9 : vector<16x16xf32>
    %cst_13 = arith.constant 0.000000e+00 : f32
    %11 = vector.broadcast %cst_13 : f32 to vector<16x16xf32>
    %12 = arith.cmpf ogt, %10, %11 : vector<16x16xf32>
    %cst_14 = arith.constant 0.00999999977 : f32
    %13 = vector.broadcast %cst_14 : f32 to vector<16x16xf32>
    %14 = arith.mulf %13, %10 : vector<16x16xf32>
    %15 = arith.select %12, %10, %14 : vector<16x16xi1>, vector<16x16xf32>
    %cst_15 = arith.constant 0.000000e+00 : f32
    %16 = vector.broadcast %cst_15 : f32 to vector<16x16xf32>
    %17 = arith.cmpf ogt, %2, %16 : vector<16x16xf32>
    %cst_16 = arith.constant -9.000000e+15 : f32
    %18 = vector.broadcast %cst_16 : f32 to vector<16x16xf32>
    %19 = arith.select %17, %15, %18 : vector<16x16xi1>, vector<16x16xf32>
    %cst_17 = arith.constant dense<0xFF800000> : vector<16xf32>
    %20 = vector.multi_reduction <maximumf>, %19, %cst_17 [1] : vector<16x16xf32> to vector<16xf32>
    %21 = vector.shape_cast %20 : vector<16xf32> to vector<16x1xf32>
    %22 = vector.broadcast %21 : vector<16x1xf32> to vector<16x16xf32>
    %23 = arith.subf %19, %22 : vector<16x16xf32>
    %24 = math.exp %23 : vector<16x16xf32>
    %cst_18 = arith.constant dense<0.000000e+00> : vector<16xf32>
    %25 = vector.multi_reduction <add>, %24, %cst_18 [1] : vector<16x16xf32> to vector<16xf32>
    %26 = vector.shape_cast %25 : vector<16xf32> to vector<16x1xf32>
    %27 = tpu.reciprocal %26 {approx = true} : vector<16x1xf32> -> vector<16x1xf32>
    %28 = vector.broadcast %27 : vector<16x1xf32> to vector<16x16xf32>
    %29 = arith.mulf %24, %28 : vector<16x16xf32>
    %c0_19 = arith.constant 0 : index
    %30 = memref.load %arg8[%c0_19] : memref<3xf32, #tpu.memory_space<smem>>
    %c1 = arith.constant 1 : index
    %31 = memref.load %arg8[%c1] : memref<3xf32, #tpu.memory_space<smem>>
    %c2 = arith.constant 2 : index
    %32 = memref.load %arg8[%c2] : memref<3xf32, #tpu.memory_space<smem>>
    %c0_20 = arith.constant 0 : index
    %c0_21 = arith.constant 0 : index
    %33 = vector.load %arg6[%c0_20, %c0_21] : memref<32x8xf32, #tpu.memory_space<vmem>>, vector<32x8xf32>
    %cst_22 = arith.constant dense<0.000000e+00> : vector<48x8xf32>
    %34 = tpu.matmul %1, %33, %cst_22 {dimension_numbers = #tpu.dot_dimension_numbers<[1], [0], [0], [1], [0, 0, 1, 1], [], []>} : vector<48x32xf32>, vector<32x8xf32>, vector<48x8xf32> -> vector<48x8xf32>
    %35 = vector.extract_strided_slice %34 {offsets = [0, 0], sizes = [16, 8], strides = [1, 1]} : vector<48x8xf32> to vector<16x8xf32>
    %36 = vector.extract_strided_slice %34 {offsets = [16, 0], sizes = [16, 8], strides = [1, 1]} : vector<48x8xf32> to vector<16x8xf32>
    %37 = vector.extract_strided_slice %34 {offsets = [32, 0], sizes = [16, 8], strides = [1, 1]} : vector<48x8xf32> to vector<16x8xf32>
    %38 = vector.shape_cast %29 : vector<16x16xf32> to vector<1x16x16xf32>
    %39 = vector.broadcast %38 : vector<1x16x16xf32> to vector<3x16x16xf32>
    %40 = arith.mulf %39, %3 : vector<3x16x16xf32>
    %41 = vector.shape_cast %40 : vector<3x16x16xf32> to vector<48x16xf32>
    %cst_23 = arith.constant dense<0.000000e+00> : vector<48x8xf32>
    %42 = tpu.matmul %41, %35, %cst_23 {dimension_numbers = #tpu.dot_dimension_numbers<[1], [0], [0], [1], [0, 0, 1, 1], [], []>} : vector<48x16xf32>, vector<16x8xf32>, vector<48x8xf32> -> vector<48x8xf32>
    %43 = vector.shape_cast %42 : vector<48x8xf32> to vector<3x16x8xf32>
    %44 = vector.broadcast %30 : f32 to vector<3x16x8xf32>
    %45 = arith.mulf %44, %43 : vector<3x16x8xf32>
    %46 = vector.shape_cast %36 : vector<16x8xf32> to vector<1x16x8xf32>
    %47 = vector.broadcast %31 : f32 to vector<1x16x8xf32>
    %48 = arith.mulf %47, %46 : vector<1x16x8xf32>
    %49 = vector.broadcast %48 : vector<1x16x8xf32> to vector<3x16x8xf32>
    %50 = arith.addf %45, %49 : vector<3x16x8xf32>
    %51 = vector.shape_cast %37 : vector<16x8xf32> to vector<1x16x8xf32>
    %52 = vector.broadcast %32 : f32 to vector<1x16x8xf32>
    %53 = arith.mulf %52, %51 : vector<1x16x8xf32>
    %54 = vector.broadcast %53 : vector<1x16x8xf32> to vector<3x16x8xf32>
    %55 = arith.addf %50, %54 : vector<3x16x8xf32>
    %56 = vector.extract_strided_slice %55 {offsets = [0, 0, 0], sizes = [1, 16, 8], strides = [1, 1, 1]} : vector<3x16x8xf32> to vector<1x16x8xf32>
    %57 = vector.shape_cast %56 : vector<1x16x8xf32> to vector<16x8xf32>
    %58 = vector.extract_strided_slice %55 {offsets = [1, 0, 0], sizes = [1, 16, 8], strides = [1, 1, 1]} : vector<3x16x8xf32> to vector<1x16x8xf32>
    %59 = vector.shape_cast %58 : vector<1x16x8xf32> to vector<16x8xf32>
    %60 = vector.extract_strided_slice %55 {offsets = [2, 0, 0], sizes = [1, 16, 8], strides = [1, 1, 1]} : vector<3x16x8xf32> to vector<1x16x8xf32>
    %61 = vector.shape_cast %60 : vector<1x16x8xf32> to vector<16x8xf32>
    %cst_24 = arith.constant 0.000000e+00 : f32
    %62 = vector.broadcast %cst_24 : f32 to vector<16x104xf32>
    %63 = tpu.concatenate %57, %59, %61, %62 in 1 : vector<16x8xf32>, vector<16x8xf32>, vector<16x8xf32>, vector<16x104xf32> -> vector<16x128xf32>
    %c0_25 = arith.constant 0 : index
    %c0_26 = arith.constant 0 : index
    %64 = vector.load %arg7[%c0_25, %c0_26] : memref<1x128xf32, #tpu.memory_space<vmem>>, vector<1x128xf32>
    %65 = vector.broadcast %64 : vector<1x128xf32> to vector<16x128xf32>
    %66 = arith.addf %63, %65 : vector<16x128xf32>
    %c0_27 = arith.constant 0 : index
    %c0_28 = arith.constant 0 : index
    %67 = vector.load %arg9[%c0_27, %c0_28] : memref<16x128xf32, #tpu.memory_space<vmem>>, vector<16x128xf32>
    tpu.vector_store %arg9[%c0_27, %c0_28], %66 {strides = array<i32>} : memref<16x128xf32, #tpu.memory_space<vmem>>, vector<16x128xf32>,
    %cst_29 = arith.constant dense<0.000000e+00> : vector<3x16xf32>
    %68 = vector.multi_reduction <add>, %40, %cst_29 [2] : vector<3x16x16xf32> to vector<3x16xf32>
    %69 = vector.shape_cast %68 : vector<3x16xf32> to vector<3x16x1xf32>
    %cst_30 = arith.constant 1.000000e-16 : f32
    %70 = vector.broadcast %cst_30 : f32 to vector<3x16x1xf32>
    %71 = arith.addf %69, %70 : vector<3x16x1xf32>
    %72 = tpu.reciprocal %71 {approx = true} : vector<3x16x1xf32> -> vector<3x16x1xf32>
    %73 = vector.broadcast %72 : vector<3x16x1xf32> to vector<3x16x16xf32>
    %74 = arith.mulf %40, %73 : vector<3x16x16xf32>
    %cst_31 = arith.constant dense<0.000000e+00> : vector<3x16xf32>
    %75 = vector.multi_reduction <add>, %74, %cst_31 [1] : vector<3x16x16xf32> to vector<3x16xf32>
    %76 = vector.shape_cast %75 : vector<3x16xf32> to vector<3x1x16xf32>
    %cst_32 = arith.constant 1.000000e-16 : f32
    %77 = vector.broadcast %cst_32 : f32 to vector<3x1x16xf32>
    %78 = arith.addf %76, %77 : vector<3x1x16xf32>
    %79 = tpu.reciprocal %78 {approx = true} : vector<3x1x16xf32> -> vector<3x1x16xf32>
    %80 = vector.broadcast %79 : vector<3x1x16xf32> to vector<3x16x16xf32>
    %81 = arith.mulf %74, %80 : vector<3x16x16xf32>
    %82 = arith.truncf %74 : vector<3x16x16xf32> to vector<3x16x16xbf16>
    %83 = arith.truncf %81 : vector<3x16x16xf32> to vector<3x16x16xbf16>
    %cst_33 = arith.constant dense<0.000000e+00> : vector<3x16x16xf32>
    %84 = tpu.matmul %82, %83, %cst_33 {dimension_numbers = #tpu.dot_dimension_numbers<[2], [2], [1], [1], [0, 0, 0, 1, 1, 1], [0], [0]>} : vector<3x16x16xbf16>, vector<3x16x16xbf16>, vector<3x16x16xf32> -> vector<3x16x16xf32>
    %c0_34 = arith.constant 0 : index
    %c0_35 = arith.constant 0 : index
    %c0_36 = arith.constant 0 : index
    %85 = vector.load %arg10[%c0_34, %c0_35, %c0_36] : memref<3x16x16xf32, #tpu.memory_space<vmem>>, vector<3x16x16xf32>
    tpu.vector_store %arg10[%c0_34, %c0_35, %c0_36], %84 {strides = array<i32>} : memref<3x16x16xf32, #tpu.memory_space<vmem>>, vector<3x16x16xf32>,
    return
  }
}

</mosaic_0001>

<llo_original>
// kernel: tpu_custom_call.1
$region0: #{tpu_custom_call.1}
  #allocation0 [shape = 'u32[]', space=smem, size = 0x4, offset = 0x4, fixed_abs, tag = 'smem constant byte address 0x4 - core index']
  #allocation1 [shape = 'u32[144,128]{1,0:T(1,128)}', space=vmem, size = 0x12000, scoped, tag = 'internal scratch']
  %s0 = inlined_call_operand.vmem [shape: f32[16,32], index: 0, kind: input, shape index: {}]
  %s1 = inlined_call_operand.vmem [shape: f32[48,32], index: 1, kind: input, shape index: {}]
  %s2 = inlined_call_operand.vmem [shape: f32[3,16,16], index: 2, kind: input, shape index: {}]
  %s3 = inlined_call_operand.vmem [shape: f32[16,16], index: 3, kind: input, shape index: {}]
  %s4 = inlined_call_operand.vmem [shape: f32[32,1], index: 4, kind: input, shape index: {}]
  %s5 = inlined_call_operand.vmem [shape: f32[1,32], index: 5, kind: input, shape index: {}]
  %s6 = inlined_call_operand.vmem [shape: f32[32,8], index: 6, kind: input, shape index: {}]
  %s7 = inlined_call_operand.vmem [shape: f32[1,128], index: 7, kind: input, shape index: {}]
  %s8 = inlined_call_operand.vmem [shape: f32[3], index: 8, kind: input, shape index: {}]
  %s9 = inlined_call_operand.hbm [shape: f32[16,128], index: 9, kind: output, shape index: {0}]
  %s10 = inlined_call_operand.hbm [shape: f32[3,16,16], index: 10, kind: output, shape index: {1}]
  %11 = xla_tuple %s9, %s10
  %s12 = sld [smem:[#allocation0]]
  $region58: #{tpu_custom_call.1} parent=0
    _
  %s14 = ssub.s32 1, %s12
  %s15 = scalar_select 0, %s14, %s12
  $region1: #{tpu_custom_call.1} parent=0
    #allocation2 [shape = 'u8[512]{0}', space=smem, size = 0x200, scoped, tag = 'input window, operand 8, single buffered']
    #allocation3 [shape = 's32[1]{0}', space=sflag, size = 0x4, scoped, tag = 'scoped memory for tpu_custom_call.1']
    #allocation4 [shape = 's32[1]{0}', space=sflag, size = 0x4, scoped, tag = 'scoped memory for tpu_custom_call.1']
    #allocation5 [shape = 'u8[8192]{0}', space=vmem, size = 0x2000, scoped, tag = 'output window, operand 0, single buffered']
    #allocation6 [shape = 'u8[24576]{0}', space=vmem, size = 0x6000, scoped, tag = 'output window, operand 1, single buffered']
    #allocation7 [shape = 's32[1]{0}', space=sflag, size = 0x4, scoped, tag = 'scoped memory for tpu_custom_call.1']
    %16 = vsyncpa [#allocation4], 0
    %17 = vsyncpa [#allocation3], 0
    %18 = vsyncpa [#allocation7], 0
    // Predicated region
    $region2: #{tpu_custom_call.1} parent=1 // pred_check
      _
    $region3: #{tpu_custom_call.1} parent=1 // pred_check_branch
      %20 = sbr.rel (0) target = $region5
    $region4: #{tpu_custom_call.1} parent=1 // pred_region
      _
    $region5: #{tpu_custom_call.1} parent=1 // pred_fallthru
      _
    // Predicated region
    $region6: #{tpu_custom_call.1} parent=1 // pred_check
      _
    $region7: #{tpu_custom_call.1} parent=1 // pred_check_branch
      %22 = sbr.rel (0) target = $region9
    $region8: #{tpu_custom_call.1} parent=1 // pred_region
      _
    $region9: #{tpu_custom_call.1} parent=1 // pred_fallthru
      _
    // Predicated region
    $region10: #{tpu_custom_call.1} parent=1 // pred_check
      _
    $region11: #{tpu_custom_call.1} parent=1 // pred_check_branch
      %24 = sbr.rel (0) target = $region13
    $region12: #{tpu_custom_call.1} parent=1 // pred_region
      _
    $region13: #{tpu_custom_call.1} parent=1 // pred_fallthru
      _
    // Predicated region
    $region14: #{tpu_custom_call.1} parent=1 // pred_check
      _
    $region15: #{tpu_custom_call.1} parent=1 // pred_check_branch
      %26 = sbr.rel (0) target = $region17
    $region16: #{tpu_custom_call.1} parent=1 // pred_region
      _
    $region17: #{tpu_custom_call.1} parent=1 // pred_fallthru
      _
    // Predicated region
    $region18: #{tpu_custom_call.1} parent=1 // pred_check
      _
    $region19: #{tpu_custom_call.1} parent=1 // pred_check_branch
      %28 = sbr.rel (0) target = $region21
    $region20: #{tpu_custom_call.1} parent=1 // pred_region
      _
    $region21: #{tpu_custom_call.1} parent=1 // pred_fallthru
      _
    // Predicated region
    $region22: #{tpu_custom_call.1} parent=1 // pred_check
      _
    $region23: #{tpu_custom_call.1} parent=1 // pred_check_branch
      %30 = sbr.rel (0) target = $region25
    $region24: #{tpu_custom_call.1} parent=1 // pred_region
      _
    $region25: #{tpu_custom_call.1} parent=1 // pred_fallthru
      _
    // Predicated region
    $region26: #{tpu_custom_call.1} parent=1 // pred_check
      _
    $region27: #{tpu_custom_call.1} parent=1 // pred_check_branch
      %32 = sbr.rel (0) target = $region29
    $region28: #{tpu_custom_call.1} parent=1 // pred_region
      _
    $region29: #{tpu_custom_call.1} parent=1 // pred_fallthru
      _
    // Predicated region
    $region30: #{tpu_custom_call.1} parent=1 // pred_check
      _
    $region31: #{tpu_custom_call.1} parent=1 // pred_check_branch
      %34 = sbr.rel (0) target = $region33
    $region32: #{tpu_custom_call.1} parent=1 // pred_region
      _
    $region33: #{tpu_custom_call.1} parent=1 // pred_fallthru
      _
    // Predicated region
    $region34: #{tpu_custom_call.1} parent=1 // pred_check
      _
    $region35: #{tpu_custom_call.1} parent=1 // pred_check_branch
      %36 = sbr.rel (0) target = $region37
    $region36: #{tpu_custom_call.1} parent=1 // pred_region
      %s38 = ssub.s32 16, 16
      %39 = vsyncadd [#allocation4], %s38
      %s41 = sshll.u32 %s8, 4
      %s42 = int_to_ptr.vmem [resolvable:$true] %s41
      %44 = dma.vmem_to_smem %s42, 16, [#allocation2], [#allocation4]
    $region37: #{tpu_custom_call.1} parent=1 // pred_fallthru
      _
    // Predicated region
    $region38: #{tpu_custom_call.1} parent=1 // pred_check
      _
    $region39: #{tpu_custom_call.1} parent=1 // pred_check_branch
      %46 = sbr.rel (0) target = $region41
    $region40: #{tpu_custom_call.1} parent=1 // pred_region
      %47 = dma.done [#allocation4], 16
    $region41: #{tpu_custom_call.1} parent=1 // pred_fallthru
      _
    %48 = sfence
    %v50 = vld [vmem:[%s0] sm:$0xff]
    %v51 = vld [vmem:[%s0 + $0x8] sm:$0xff]
    %v52 = vld [vmem:[%s1] sm:$0xff]
    %v53 = vld [vmem:[%s1 + $0x8] sm:$0xff]
    %v54 = vld [vmem:[%s1 + $0x10] sm:$0xff]
    %v55 = vld [vmem:[%s1 + $0x18] sm:$0xff]
    %v56 = vld [vmem:[%s1 + $0x20] sm:$0xff]
    %v57 = vld [vmem:[%s1 + $0x28] sm:$0xff]
    %v58 = vld [vmem:[%s3] sm:$0xff]
    %v59 = vld [vmem:[%s3 + $0x8] sm:$0xff]
    %v60 = vld [vmem:[%s2] sm:$0xff]
    %v61 = vld [vmem:[%s2 + $0x8] sm:$0xff]
    %v62 = vld [vmem:[%s2 + $0x10] sm:$0xff]
    %v63 = vld [vmem:[%s2 + $0x18] sm:$0xff]
    %v64 = vld [vmem:[%s2 + $0x20] sm:$0xff]
    %v65 = vld [vmem:[%s2 + $0x28] sm:$0xff]
    %v66 = vld [vmem:[%s4] sm:$0xff]
    %v67 = vld [vmem:[%s4 + $0x8] sm:$0xff]
    %v68 = vld [vmem:[%s4 + $0x10] sm:$0xff]
    %v69 = vld [vmem:[%s4 + $0x18] sm:$0xff]
    %vm70 = vcmask 261120
    %v72 = vsel %vm70, %v50, 0
    %v75 = vsel %vm70, %v51, 0
    %77 = vmatprep.subr.mxu0 0.0
    %78 = vmatpush1.msra.mxu0 %v66
    %79 = vmatprep.subr.mxu0 0.0
    %80 = vmatpush1.msra.mxu0 %v67
    %81 = vmatprep.subr.mxu0 0.0
    %82 = vmatpush1.msra.mxu0 %v68
    %83 = vmatprep.subr.mxu0 0.0
    %84 = vmatpush1.msra.mxu0 %v69
    %85 = vmatprep.subr.mxu0 0.0
    %86 = vmatpush1.msra.mxu0 0.0
    %87 = vmatprep.subr.mxu0 0.0
    %88 = vmatpush1.msra.mxu0 0.0
    %89 = vmatprep.subr.mxu0 0.0
    %90 = vmatpush1.msra.mxu0 0.0
    %91 = vmatprep.subr.mxu0 0.0
    %92 = vmatpush1.msra.mxu0 0.0
    %93 = vmatprep.subr.mxu0 0.0
    %94 = vmatpush1.msra.mxu0 0.0
    %95 = vmatprep.subr.mxu0 0.0
    %96 = vmatpush1.msra.mxu0 0.0
    %97 = vmatprep.subr.mxu0 0.0
    %98 = vmatpush1.msra.mxu0 0.0
    %99 = vmatprep.subr.mxu0 0.0
    %100 = vmatpush1.msra.mxu0 0.0
    %101 = vmatprep.subr.mxu0 0.0
    %102 = vmatpush1.msra.mxu0 0.0
    %103 = vmatprep.subr.mxu0 0.0
    %104 = vmatpush1.msra.mxu0 0.0
    %105 = vmatprep.subr.mxu0 0.0
    %106 = vmatpush1.msra.mxu0 0.0
    %107 = vmatprep.subr.mxu0 0.0
    %108 = vmatpush1.msra.mxu0 0.0
    %109 = vmatprep.subr.mxu0 0.0
    %110 = vmatpush1.msra.mxu0 0.0
    %111 = vmatprep.subr.mxu0 0.0
    %112 = vmatpush1.msra.mxu0 0.0
    %113 = vmatprep.subr.mxu0 0.0
    %114 = vmatpush1.msra.mxu0 0.0
    %115 = vmatprep.subr.mxu0 0.0
    %116 = vmatpush1.msra.mxu0 0.0
    %117 = vmatprep.subr.mxu0 0.0
    %118 = vmatpush1.msra.mxu0 0.0
    %119 = vmatprep.subr.mxu0 0.0
    %120 = vmatpush1.msra.mxu0 0.0
    %121 = vmatprep.subr.mxu0 0.0
    %122 = vmatpush1.msra.mxu0 0.0
    %123 = vmatprep.subr.mxu0 0.0
    %124 = vmatpush1.msra.mxu0 0.0
    %125 = vmatprep.subr.mxu0 0.0
    %126 = vmatpush1.msra.mxu0 0.0
    %127 = vmatprep.subr.mxu0 0.0
    %128 = vmatpush1.msra.mxu0 0.0
    %129 = vmatprep.subr.mxu0 0.0
    %130 = vmatpush1.msra.mxu0 0.0
    %131 = vmatprep.subr.mxu0 0.0
    %132 = vmatpush1.msra.mxu0 0.0
    %133 = vmatprep.subr.mxu0 0.0
    %134 = vmatpush1.msra.mxu0 0.0
    %135 = vmatprep.subr.mxu0 0.0
    %136 = vmatpush1.msra.mxu0 0.0
    %137 = vmatprep.subr.mxu0 0.0
    %138 = vmatpush1.msra.mxu0 0.0
    %139 = vmatprep.subr.mxu0 0.0
    %140 = vmatpush1.msra.mxu0 0.0
    %141 = vmatprep.mubr.f32.mxu0 0.0
    %142 = vmatmul.mubr.f32.gmra.mrb[0].mxu0 %v72
    %v143 = vpop.f32.mrb[0].mxu0
    %v144 = vadd.f32 0.0, %v143
    %v145 = vpop.f32.mrb[0].mxu0
    %146 = vmatprep.mubr.f32.mxu0 0.0
    %147 = vmatmul.mubr.f32.gmra.mrb[0].mxu0 %v75
    %v148 = vpop.f32.mrb[0].mxu0
    %v149 = vadd.f32 0.0, %v148
    %v150 = vpop.f32.mrb[0].mxu0
    %151 = vdwg.mxu0
    %v152 = vld [vmem:[%s5] sm:$0x1]
    %v154 = vsel %vm70, %v152, 0
    %156 = vmatprep.subr.mxu0 0.0
    %157 = vmatpush1.xpose.msra.mxu0 %v72
    %158 = vmatprep.subr.mxu0 0.0
    %159 = vmatpush1.xpose.msra.mxu0 %v75
    %160 = vmatprep.subr.mxu0 0.0
    %161 = vmatpush1.xpose.msra.mxu0 0.0
    %162 = vmatprep.subr.mxu0 0.0
    %163 = vmatpush1.xpose.msra.mxu0 0.0
    %164 = vmatprep.subr.mxu0 0.0
    %165 = vmatpush1.xpose.msra.mxu0 0.0
    %166 = vmatprep.subr.mxu0 0.0
    %167 = vmatpush1.xpose.msra.mxu0 0.0
    %168 = vmatprep.subr.mxu0 0.0
    %169 = vmatpush1.xpose.msra.mxu0 0.0
    %170 = vmatprep.subr.mxu0 0.0
    %171 = vmatpush1.xpose.msra.mxu0 0.0
    %172 = vmatprep.subr.mxu0 0.0
    %173 = vmatpush1.xpose.msra.mxu0 0.0
    %174 = vmatprep.subr.mxu0 0.0
    %175 = vmatpush1.xpose.msra.mxu0 0.0
    %176 = vmatprep.subr.mxu0 0.0
    %177 = vmatpush1.xpose.msra.mxu0 0.0
    %178 = vmatprep.subr.mxu0 0.0
    %179 = vmatpush1.xpose.msra.mxu0 0.0
    %180 = vmatprep.subr.mxu0 0.0
    %181 = vmatpush1.xpose.msra.mxu0 0.0
    %182 = vmatprep.subr.mxu0 0.0
    %183 = vmatpush1.xpose.msra.mxu0 0.0
    %184 = vmatprep.subr.mxu0 0.0
    %185 = vmatpush1.xpose.msra.mxu0 0.0
    %186 = vmatprep.subr.mxu0 0.0
    %187 = vmatpush1.xpose.msra.mxu0 0.0
    %188 = vmatprep.subr.mxu0 0.0
    %189 = vmatpush1.xpose.msra.mxu0 0.0
    %190 = vmatprep.subr.mxu0 0.0
    %191 = vmatpush1.xpose.msra.mxu0 0.0
    %192 = vmatprep.subr.mxu0 0.0
    %193 = vmatpush1.xpose.msra.mxu0 0.0
    %194 = vmatprep.subr.mxu0 0.0
    %195 = vmatpush1.xpose.msra.mxu0 0.0
    %196 = vmatprep.subr.mxu0 0.0
    %197 = vmatpush1.xpose.msra.mxu0 0.0
    %198 = vmatprep.subr.mxu0 0.0
    %199 = vmatpush1.xpose.msra.mxu0 0.0
    %200 = vmatprep.subr.mxu0 0.0
    %201 = vmatpush1.xpose.msra.mxu0 0.0
    %202 = vmatprep.subr.mxu0 0.0
    %203 = vmatpush1.xpose.msra.mxu0 0.0
    %204 = vmatprep.subr.mxu0 0.0
    %205 = vmatpush1.xpose.msra.mxu0 0.0
    %206 = vmatprep.subr.mxu0 0.0
    %207 = vmatpush1.xpose.msra.mxu0 0.0
    %208 = vmatprep.subr.mxu0 0.0
    %209 = vmatpush1.xpose.msra.mxu0 0.0
    %210 = vmatprep.subr.mxu0 0.0
    %211 = vmatpush1.xpose.msra.mxu0 0.0
    %212 = vmatprep.subr.mxu0 0.0
    %213 = vmatpush1.xpose.msra.mxu0 0.0
    %214 = vmatprep.subr.mxu0 0.0
    %215 = vmatpush1.xpose.msra.mxu0 0.0
    %216 = vmatprep.subr.mxu0 0.0
    %217 = vmatpush1.xpose.msra.mxu0 0.0
    %218 = vmatprep.subr.mxu0 0.0
    %219 = vmatpush1.xpose.msra.mxu0 0.0
    %220 = vmatprep.mubr.f32.mxu0 0.0
    %221 = vmatmul.mubr.f32.gmra.mrb[0].mxu0 %v154
    %v222 = vpop.f32.mrb[0].mxu0
    %v223 = vadd.f32 0.0, %v222
    %v224 = vpop.f32.mrb[0].mxu0
    %225 = vdwg.mxu0
    %227 = vset.pattern.permute.xlu0 0
    %228 = vperm.xlu0 %227, %v144
    %v229 = vpop.permute.xlu0 %228
    %232 = vset.pattern.permute.xlu0 0
    %233 = vperm.xlu0 %232, %v149
    %v234 = vpop.permute.xlu0 %233
    %v236 = vlaneseq
    %v237 = vshrl.u32 %v236, 7
    %v238 = vsub.s32 0, %v237
    %v239 = vrot.slane %v223, %v238
    %v240 = vadd.f32 %v229, %v239
    %v241 = vadd.f32 %v234, %v239
    %vm242 = vcmp.gt.f32.partialorder %v240, 0.0
    %vm243 = vcmp.gt.f32.partialorder %v241, 0.0
    %v244 = vmul.f32 %v240, 0.01
    %v245 = vmul.f32 %v241, 0.01
    %v246 = vsel %vm242, %v240, %v244
    %v247 = vsel %vm243, %v241, %v245
    %vm248 = vcmp.gt.f32.partialorder %v58, 0.0
    %vm249 = vcmp.gt.f32.partialorder %v59, 0.0
    %v250 = vsel %vm248, %v246, -9e+15
    %v251 = vsel %vm249, %v247, -9e+15
    %vm252 = vcmask 130048
    %v253 = vsel %vm252, %v250, -inf
    %254 = vmax.xlane.f32.xlu0 %v253
    %v255 = vpop.xlane.xlu0 %254
    %v256 = vsel %vm252, %v251, -inf
    %257 = vmax.xlane.f32.xlu0 %v256
    %v258 = vpop.xlane.xlu0 %257
    %v259 = vsub.f32 %v250, %v255
    %v260 = vsub.f32 %v251, %v258
    %v261 = vmul.f32 %v259, 1.442695
    %v262 = vpow.pop %v261
    %v263 = vmul.f32 %v260, 1.442695
    %v264 = vpow.pop %v263
    %v265 = vsel %vm252, %v262, 0.0
    %266 = vadd.xlane.f32.xlu0 %v265
    %v267 = vpop.xlane.xlu0 %266
    %v268 = vsel %vm252, %v264, 0.0
    %269 = vadd.xlane.f32.xlu0 %v268
    %v270 = vpop.xlane.xlu0 %269
    %v271 = vrcp.pop %v267
    %v272 = vrcp.pop %v270
    %v273 = vmul.f32 %v262, %v271
    %v274 = vmul.f32 %v264, %v272
    %s275 = sld [smem:[#allocation2]]
    %s276 = sld [smem:[#allocation2 + $0x1]]
    %s277 = sld [smem:[#allocation2 + $0x2]]
    %v278 = vld [vmem:[%s6] sm:$0xff]
    %v279 = vld [vmem:[%s6 + $0x8] sm:$0xff]
    %v280 = vld [vmem:[%s6 + $0x10] sm:$0xff]
    %v281 = vld [vmem:[%s6 + $0x18] sm:$0xff]
    %v283 = vsel %vm70, %v52, 0
    %v286 = vsel %vm70, %v53, 0
    %v289 = vsel %vm70, %v54, 0
    %v292 = vsel %vm70, %v55, 0
    %v295 = vsel %vm70, %v56, 0
    %v298 = vsel %vm70, %v57, 0
    %300 = vmatprep.subr.mxu0 0.0
    %301 = vmatpush1.msra.mxu0 %v278
    %302 = vmatprep.subr.mxu0 0.0
    %303 = vmatpush1.msra.mxu0 %v279
    %304 = vmatprep.subr.mxu0 0.0
    %305 = vmatpush1.msra.mxu0 %v280
    %306 = vmatprep.subr.mxu0 0.0
    %307 = vmatpush1.msra.mxu0 %v281
    %308 = vmatprep.subr.mxu0 0.0
    %309 = vmatpush1.msra.mxu0 0.0
    %310 = vmatprep.subr.mxu0 0.0
    %311 = vmatpush1.msra.mxu0 0.0
    %312 = vmatprep.subr.mxu0 0.0
    %313 = vmatpush1.msra.mxu0 0.0
    %314 = vmatprep.subr.mxu0 0.0
    %315 = vmatpush1.msra.mxu0 0.0
    %316 = vmatprep.subr.mxu0 0.0
    %317 = vmatpush1.msra.mxu0 0.0
    %318 = vmatprep.subr.mxu0 0.0
    %319 = vmatpush1.msra.mxu0 0.0
    %320 = vmatprep.subr.mxu0 0.0
    %321 = vmatpush1.msra.mxu0 0.0
    %322 = vmatprep.subr.mxu0 0.0
    %323 = vmatpush1.msra.mxu0 0.0
    %324 = vmatprep.subr.mxu0 0.0
    %325 = vmatpush1.msra.mxu0 0.0
    %326 = vmatprep.subr.mxu0 0.0
    %327 = vmatpush1.msra.mxu0 0.0
    %328 = vmatprep.subr.mxu0 0.0
    %329 = vmatpush1.msra.mxu0 0.0
    %330 = vmatprep.subr.mxu0 0.0
    %331 = vmatpush1.msra.mxu0 0.0
    %332 = vmatprep.subr.mxu0 0.0
    %333 = vmatpush1.msra.mxu0 0.0
    %334 = vmatprep.subr.mxu0 0.0
    %335 = vmatpush1.msra.mxu0 0.0
    %336 = vmatprep.subr.mxu0 0.0
    %337 = vmatpush1.msra.mxu0 0.0
    %338 = vmatprep.subr.mxu0 0.0
    %339 = vmatpush1.msra.mxu0 0.0
    %340 = vmatprep.subr.mxu0 0.0
    %341 = vmatpush1.msra.mxu0 0.0
    %342 = vmatprep.subr.mxu0 0.0
    %343 = vmatpush1.msra.mxu0 0.0
    %344 = vmatprep.subr.mxu0 0.0
    %345 = vmatpush1.msra.mxu0 0.0
    %346 = vmatprep.subr.mxu0 0.0
    %347 = vmatpush1.msra.mxu0 0.0
    %348 = vmatprep.subr.mxu0 0.0
    %349 = vmatpush1.msra.mxu0 0.0
    %350 = vmatprep.subr.mxu0 0.0
    %351 = vmatpush1.msra.mxu0 0.0
    %352 = vmatprep.subr.mxu0 0.0
    %353 = vmatpush1.msra.mxu0 0.0
    %354 = vmatprep.subr.mxu0 0.0
    %355 = vmatpush1.msra.mxu0 0.0
    %356 = vmatprep.subr.mxu0 0.0
    %357 = vmatpush1.msra.mxu0 0.0
    %358 = vmatprep.subr.mxu0 0.0
    %359 = vmatpush1.msra.mxu0 0.0
    %360 = vmatprep.subr.mxu0 0.0
    %361 = vmatpush1.msra.mxu0 0.0
    %362 = vmatprep.subr.mxu0 0.0
    %363 = vmatpush1.msra.mxu0 0.0
    %364 = vmatprep.mubr.f32.mxu0 0.0
    %365 = vmatmul.mubr.f32.gmra.mrb[0].mxu0 %v283
    %v366 = vpop.f32.mrb[0].mxu0
    %v367 = vadd.f32 0.0, %v366
    %v368 = vpop.f32.mrb[0].mxu0
    %369 = vmatprep.mubr.f32.mxu0 0.0
    %370 = vmatmul.mubr.f32.gmra.mrb[0].mxu0 %v286
    %v371 = vpop.f32.mrb[0].mxu0
    %v372 = vadd.f32 0.0, %v371
    %v373 = vpop.f32.mrb[0].mxu0
    %374 = vmatprep.mubr.f32.mxu0 0.0
    %375 = vmatmul.mubr.f32.gmra.mrb[0].mxu0 %v289
    %v376 = vpop.f32.mrb[0].mxu0
    %v377 = vadd.f32 0.0, %v376
    %v378 = vpop.f32.mrb[0].mxu0
    %379 = vmatprep.mubr.f32.mxu0 0.0
    %380 = vmatmul.mubr.f32.gmra.mrb[0].mxu0 %v292
    %v381 = vpop.f32.mrb[0].mxu0
    %v382 = vadd.f32 0.0, %v381
    %v383 = vpop.f32.mrb[0].mxu0
    %384 = vmatprep.mubr.f32.mxu0 0.0
    %385 = vmatmul.mubr.f32.gmra.mrb[0].mxu0 %v295
    %v386 = vpop.f32.mrb[0].mxu0
    %v387 = vadd.f32 0.0, %v386
    %v388 = vpop.f32.mrb[0].mxu0
    %389 = vmatprep.mubr.f32.mxu0 0.0
    %390 = vmatmul.mubr.f32.gmra.mrb[0].mxu0 %v298
    %v391 = vpop.f32.mrb[0].mxu0
    %v392 = vadd.f32 0.0, %v391
    %v393 = vpop.f32.mrb[0].mxu0
    %394 = vdwg.mxu0
    %v395 = vmul.f32 %v273, %v60
    %v396 = vmul.f32 %v274, %v61
    %v397 = vmul.f32 %v273, %v62
    %v398 = vmul.f32 %v274, %v63
    %v399 = vmul.f32 %v273, %v64
    %v400 = vmul.f32 %v274, %v65
    %v402 = vsel %vm252, %v395, 0
    %v405 = vsel %vm252, %v396, 0
    %v408 = vsel %vm252, %v397, 0
    %v411 = vsel %vm252, %v398, 0
    %v414 = vsel %vm252, %v399, 0
    %v417 = vsel %vm252, %v400, 0
    %419 = vmatprep.subr.mxu0 0.0
    %420 = vmatpush1.msra.mxu0 %v367
    %421 = vmatprep.subr.mxu0 0.0
    %422 = vmatpush1.msra.mxu0 %v372
    %423 = vmatprep.subr.mxu0 0.0
    %424 = vmatpush1.msra.mxu0 0.0
    %425 = vmatprep.subr.mxu0 0.0
    %426 = vmatpush1.msra.mxu0 0.0
    %427 = vmatprep.subr.mxu0 0.0
    %428 = vmatpush1.msra.mxu0 0.0
    %429 = vmatprep.subr.mxu0 0.0
    %430 = vmatpush1.msra.mxu0 0.0
    %431 = vmatprep.subr.mxu0 0.0
    %432 = vmatpush1.msra.mxu0 0.0
    %433 = vmatprep.subr.mxu0 0.0
    %434 = vmatpush1.msra.mxu0 0.0
    %435 = vmatprep.subr.mxu0 0.0
    %436 = vmatpush1.msra.mxu0 0.0
    %437 = vmatprep.subr.mxu0 0.0
    %438 = vmatpush1.msra.mxu0 0.0
    %439 = vmatprep.subr.mxu0 0.0
    %440 = vmatpush1.msra.mxu0 0.0
    %441 = vmatprep.subr.mxu0 0.0
    %442 = vmatpush1.msra.mxu0 0.0
    %443 = vmatprep.subr.mxu0 0.0
    %444 = vmatpush1.msra.mxu0 0.0
    %445 = vmatprep.subr.mxu0 0.0
    %446 = vmatpush1.msra.mxu0 0.0
    %447 = vmatprep.subr.mxu0 0.0
    %448 = vmatpush1.msra.mxu0 0.0
    %449 = vmatprep.subr.mxu0 0.0
    %450 = vmatpush1.msra.mxu0 0.0
    %451 = vmatprep.subr.mxu0 0.0
    %452 = vmatpush1.msra.mxu0 0.0
    %453 = vmatprep.subr.mxu0 0.0
    %454 = vmatpush1.msra.mxu0 0.0
    %455 = vmatprep.subr.mxu0 0.0
    %456 = vmatpush1.msra.mxu0 0.0
    %457 = vmatprep.subr.mxu0 0.0
    %458 = vmatpush1.msra.mxu0 0.0
    %459 = vmatprep.subr.mxu0 0.0
    %460 = vmatpush1.msra.mxu0 0.0
    %461 = vmatprep.subr.mxu0 0.0
    %462 = vmatpush1.msra.mxu0 0.0
    %463 = vmatprep.subr.mxu0 0.0
    %464 = vmatpush1.msra.mxu0 0.0
    %465 = vmatprep.subr.mxu0 0.0
    %466 = vmatpush1.msra.mxu0 0.0
    %467 = vmatprep.subr.mxu0 0.0
    %468 = vmatpush1.msra.mxu0 0.0
    %469 = vmatprep.subr.mxu0 0.0
    %470 = vmatpush1.msra.mxu0 0.0
    %471 = vmatprep.subr.mxu0 0.0
    %472 = vmatpush1.msra.mxu0 0.0
    %473 = vmatprep.subr.mxu0 0.0
    %474 = vmatpush1.msra.mxu0 0.0
    %475 = vmatprep.subr.mxu0 0.0
    %476 = vmatpush1.msra.mxu0 0.0
    %477 = vmatprep.subr.mxu0 0.0
    %478 = vmatpush1.msra.mxu0 0.0
    %479 = vmatprep.subr.mxu0 0.0
    %480 = vmatpush1.msra.mxu0 0.0
    %481 = vmatprep.subr.mxu0 0.0
    %482 = vmatpush1.msra.mxu0 0.0
    %483 = vmatprep.mubr.f32.mxu0 0.0
    %484 = vmatmul.mubr.f32.gmra.mrb[0].mxu0 %v402
    %v485 = vpop.f32.mrb[0].mxu0
    %v486 = vadd.f32 0.0, %v485
    %v487 = vpop.f32.mrb[0].mxu0
    %488 = vmatprep.mubr.f32.mxu0 0.0
    %489 = vmatmul.mubr.f32.gmra.mrb[0].mxu0 %v405
    %v490 = vpop.f32.mrb[0].mxu0
    %v491 = vadd.f32 0.0, %v490
    %v492 = vpop.f32.mrb[0].mxu0
    %493 = vmatprep.mubr.f32.mxu0 0.0
    %494 = vmatmul.mubr.f32.gmra.mrb[0].mxu0 %v408
    %v495 = vpop.f32.mrb[0].mxu0
    %v496 = vadd.f32 0.0, %v495
    %v497 = vpop.f32.mrb[0].mxu0
    %498 = vmatprep.mubr.f32.mxu0 0.0
    %499 = vmatmul.mubr.f32.gmra.mrb[0].mxu0 %v411
    %v500 = vpop.f32.mrb[0].mxu0
    %v501 = vadd.f32 0.0, %v500
    %v502 = vpop.f32.mrb[0].mxu0
    %503 = vmatprep.mubr.f32.mxu0 0.0
    %504 = vmatmul.mubr.f32.gmra.mrb[0].mxu0 %v414
    %v505 = vpop.f32.mrb[0].mxu0
    %v506 = vadd.f32 0.0, %v505
    %v507 = vpop.f32.mrb[0].mxu0
    %508 = vmatprep.mubr.f32.mxu0 0.0
    %509 = vmatmul.mubr.f32.gmra.mrb[0].mxu0 %v417
    %v510 = vpop.f32.mrb[0].mxu0
    %v511 = vadd.f32 0.0, %v510
    %v512 = vpop.f32.mrb[0].mxu0
    %513 = vdwg.mxu0
    %v514 = vstv %s275
    %v515 = vmul.f32 %v514, %v486
    %v516 = vmul.f32 %v514, %v491
    %v517 = vmul.f32 %v514, %v496
    %v518 = vmul.f32 %v514, %v501
    %v519 = vmul.f32 %v514, %v506
    %v520 = vmul.f32 %v514, %v511
    %v521 = vstv %s276
    %v522 = vmul.f32 %v521, %v377
    %v523 = vmul.f32 %v521, %v382
    %v524 = vadd.f32 %v515, %v522
    %v525 = vadd.f32 %v516, %v523
    %v526 = vadd.f32 %v517, %v522
    %v527 = vadd.f32 %v518, %v523
    %v528 = vadd.f32 %v519, %v522
    %v529 = vadd.f32 %v520, %v523
    %v530 = vstv %s277
    %v531 = vmul.f32 %v530, %v387
    %v532 = vmul.f32 %v530, %v392
    %v533 = vadd.f32 %v524, %v531
    %v534 = vadd.f32 %v525, %v532
    %v535 = vadd.f32 %v526, %v531
    %v536 = vadd.f32 %v527, %v532
    %v537 = vadd.f32 %v528, %v531
    %v538 = vadd.f32 %v529, %v532
    %541 = vrot.lane.b32.xlu0 %v535, 8
    %v542 = vpop.permute.xlu0 %541
    %543 = vrot.lane.b32.xlu0 %v536, 8
    %v544 = vpop.permute.xlu0 %543
    %549 = vrot.lane.b32.xlu0 %v537, 16
    %v550 = vpop.permute.xlu0 %549
    %551 = vrot.lane.b32.xlu0 %v538, 16
    %v552 = vpop.permute.xlu0 %551
    %vm555 = vcmask 64512
    %v556 = vsel %vm555, %v533, %v542
    %v557 = vsel %vm555, %v534, %v544
    %v558 = vsel %vm252, %v556, %v550
    %v559 = vsel %vm252, %v557, %v552
    %vm560 = vcmask 195584
    %v561 = vsel %vm560, %v558, 0.0
    %v562 = vsel %vm560, %v559, 0.0
    %v563 = vld [vmem:[%s7] sm:$0x1]
    %v565 = vlaneseq
    %v566 = vshrl.u32 %v565, 7
    %v567 = vsub.s32 0, %v566
    %v568 = vrot.slane %v563, %v567
    %v570 = vadd.f32 %v561, %v568
    %v571 = vadd.f32 %v562, %v568
    %572 = vst [vmem:[#allocation5] sm:$0xff] %v570
    %573 = vst [vmem:[#allocation5 + $0x8] sm:$0xff] %v571
    %v574 = vsel %vm252, %v395, 0.0
    %575 = vadd.xlane.f32.xlu0 %v574
    %v576 = vpop.xlane.xlu0 %575
    %v577 = vsel %vm252, %v396, 0.0
    %578 = vadd.xlane.f32.xlu0 %v577
    %v579 = vpop.xlane.xlu0 %578
    %v580 = vsel %vm252, %v397, 0.0
    %581 = vadd.xlane.f32.xlu0 %v580
    %v582 = vpop.xlane.xlu0 %581
    %v583 = vsel %vm252, %v398, 0.0
    %584 = vadd.xlane.f32.xlu0 %v583
    %v585 = vpop.xlane.xlu0 %584
    %v586 = vsel %vm252, %v399, 0.0
    %587 = vadd.xlane.f32.xlu0 %v586
    %v588 = vpop.xlane.xlu0 %587
    %v589 = vsel %vm252, %v400, 0.0
    %590 = vadd.xlane.f32.xlu0 %v589
    %v591 = vpop.xlane.xlu0 %590
    %v592 = vadd.f32 %v576, 1e-16
    %v593 = vadd.f32 %v579, 1e-16
    %v594 = vadd.f32 %v582, 1e-16
    %v595 = vadd.f32 %v585, 1e-16
    %v596 = vadd.f32 %v588, 1e-16
    %v597 = vadd.f32 %v591, 1e-16
    %v598 = vrcp.pop %v592
    %v599 = vrcp.pop %v593
    %v600 = vrcp.pop %v594
    %v601 = vrcp.pop %v595
    %v602 = vrcp.pop %v596
    %v603 = vrcp.pop %v597
    %v604 = vmul.f32 %v395, %v598
    %v605 = vmul.f32 %v396, %v599
    %v606 = vmul.f32 %v397, %v600
    %v607 = vmul.f32 %v398, %v601
    %v608 = vmul.f32 %v399, %v602
    %v609 = vmul.f32 %v400, %v603
    %v610 = vsel %vm252, %v604, 0.0
    %v611 = vsel %vm252, %v605, 0.0
    %v612 = vadd.f32 %v610, %v611
    %v613 = vrot.slane %v612, 4
    %v614 = vadd.f32 %v612, %v613
    %v615 = vrot.slane %v614, 2
    %v616 = vadd.f32 %v614, %v615
    %v617 = vrot.slane %v616, 1
    %v618 = vadd.f32 %v616, %v617
    %v619 = vsel %vm252, %v606, 0.0
    %v620 = vsel %vm252, %v607, 0.0
    %v621 = vadd.f32 %v619, %v620
    %v622 = vrot.slane %v621, 4
    %v623 = vadd.f32 %v621, %v622
    %v624 = vrot.slane %v623, 2
    %v625 = vadd.f32 %v623, %v624
    %v626 = vrot.slane %v625, 1
    %v627 = vadd.f32 %v625, %v626
    %v628 = vsel %vm252, %v608, 0.0
    %v629 = vsel %vm252, %v609, 0.0
    %v630 = vadd.f32 %v628, %v629
    %v631 = vrot.slane %v630, 4
    %v632 = vadd.f32 %v630, %v631
    %v633 = vrot.slane %v632, 2
    %v634 = vadd.f32 %v632, %v633
    %v635 = vrot.slane %v634, 1
    %v636 = vadd.f32 %v634, %v635
    %v637 = vadd.f32 %v618, 1e-16
    %v638 = vadd.f32 %v627, 1e-16
    %v639 = vadd.f32 %v636, 1e-16
    %v640 = vrcp.pop %v637
    %v641 = vrcp.pop %v638
    %v642 = vrcp.pop %v639
    %v643 = vmul.f32 %v604, %v640
    %v644 = vmul.f32 %v605, %v640
    %v645 = vmul.f32 %v606, %v641
    %v646 = vmul.f32 %v607, %v641
    %v647 = vmul.f32 %v608, %v642
    %v648 = vmul.f32 %v609, %v642
    %v649 = vpack.c.bf16 %v605, %v604
    %v650 = vpack.c.bf16 %v607, %v606
    %v651 = vpack.c.bf16 %v609, %v608
    %v652 = vpack.c.bf16 %v644, %v643
    %v653 = vpack.c.bf16 %v646, %v645
    %v654 = vpack.c.bf16 %v648, %v647
    %v656 = vsel %vm252, %v649, 0
    %v659 = vsel %vm252, %v652, 0
    %661 = vmatprep.subr.bf16.mxu0 0
    %662 = vmatpush1.bf16.xpose.msra.mxu0 %v659
    %663 = vmatprep.subr.bf16.mxu0 0
    %664 = vmatpush1.bf16.xpose.msra.mxu0 0
    %665 = vmatprep.subr.bf16.mxu0 0
    %666 = vmatpush1.bf16.xpose.msra.mxu0 0
    %667 = vmatprep.subr.bf16.mxu0 0
    %668 = vmatpush1.bf16.xpose.msra.mxu0 0
    %669 = vmatprep.subr.bf16.mxu0 0
    %670 = vmatpush1.bf16.xpose.msra.mxu0 0
    %671 = vmatprep.subr.bf16.mxu0 0
    %672 = vmatpush1.bf16.xpose.msra.mxu0 0
    %673 = vmatprep.subr.bf16.mxu0 0
    %674 = vmatpush1.bf16.xpose.msra.mxu0 0
    %675 = vmatprep.subr.bf16.mxu0 0
    %676 = vmatpush1.bf16.xpose.msra.mxu0 0
    %677 = vmatprep.subr.bf16.mxu0 0
    %678 = vmatpush1.bf16.xpose.msra.mxu0 0
    %679 = vmatprep.subr.bf16.mxu0 0
    %680 = vmatpush1.bf16.xpose.msra.mxu0 0
    %681 = vmatprep.subr.bf16.mxu0 0
    %682 = vmatpush1.bf16.xpose.msra.mxu0 0
    %683 = vmatprep.subr.bf16.mxu0 0
    %684 = vmatpush1.bf16.xpose.msra.mxu0 0
    %685 = vmatprep.subr.bf16.mxu0 0
    %686 = vmatpush1.bf16.xpose.msra.mxu0 0
    %687 = vmatprep.subr.bf16.mxu0 0
    %688 = vmatpush1.bf16.xpose.msra.mxu0 0
    %689 = vmatprep.subr.bf16.mxu0 0
    %690 = vmatpush1.bf16.xpose.msra.mxu0 0
    %691 = vmatprep.subr.bf16.mxu0 0
    %692 = vmatpush1.bf16.xpose.msra.mxu0 0
    %693 = vmatprep.mubr.bf16.mxu0 0
    %694 = vmatmul.mubr.bf16.gmra.mrb[0].mxu0 %v656
    %v695 = vpop.f32.mrb[0].mxu0
    %v696 = vadd.f32 0.0, %v695
    %v697 = vpop.f32.mrb[0].mxu0
    %v698 = vpop.f32.mrb[0].mxu0
    %v699 = vadd.f32 0.0, %v698
    %v700 = vpop.f32.mrb[0].mxu0
    %701 = vdwg.mxu0
    %v703 = vsel %vm252, %v650, 0
    %v706 = vsel %vm252, %v653, 0
    %708 = vmatprep.subr.bf16.mxu0 0
    %709 = vmatpush1.bf16.xpose.msra.mxu0 %v706
    %710 = vmatprep.subr.bf16.mxu0 0
    %711 = vmatpush1.bf16.xpose.msra.mxu0 0
    %712 = vmatprep.subr.bf16.mxu0 0
    %713 = vmatpush1.bf16.xpose.msra.mxu0 0
    %714 = vmatprep.subr.bf16.mxu0 0
    %715 = vmatpush1.bf16.xpose.msra.mxu0 0
    %716 = vmatprep.subr.bf16.mxu0 0
    %717 = vmatpush1.bf16.xpose.msra.mxu0 0
    %718 = vmatprep.subr.bf16.mxu0 0
    %719 = vmatpush1.bf16.xpose.msra.mxu0 0
    %720 = vmatprep.subr.bf16.mxu0 0
    %721 = vmatpush1.bf16.xpose.msra.mxu0 0
    %722 = vmatprep.subr.bf16.mxu0 0
    %723 = vmatpush1.bf16.xpose.msra.mxu0 0
    %724 = vmatprep.subr.bf16.mxu0 0
    %725 = vmatpush1.bf16.xpose.msra.mxu0 0
    %726 = vmatprep.subr.bf16.mxu0 0
    %727 = vmatpush1.bf16.xpose.msra.mxu0 0
    %728 = vmatprep.subr.bf16.mxu0 0
    %729 = vmatpush1.bf16.xpose.msra.mxu0 0
    %730 = vmatprep.subr.bf16.mxu0 0
    %731 = vmatpush1.bf16.xpose.msra.mxu0 0
    %732 = vmatprep.subr.bf16.mxu0 0
    %733 = vmatpush1.bf16.xpose.msra.mxu0 0
    %734 = vmatprep.subr.bf16.mxu0 0
    %735 = vmatpush1.bf16.xpose.msra.mxu0 0
    %736 = vmatprep.subr.bf16.mxu0 0
    %737 = vmatpush1.bf16.xpose.msra.mxu0 0
    %738 = vmatprep.subr.bf16.mxu0 0
    %739 = vmatpush1.bf16.xpose.msra.mxu0 0
    %740 = vmatprep.mubr.bf16.mxu0 0
    %741 = vmatmul.mubr.bf16.gmra.mrb[0].mxu0 %v703
    %v742 = vpop.f32.mrb[0].mxu0
    %v743 = vadd.f32 0.0, %v742
    %v744 = vpop.f32.mrb[0].mxu0
    %v745 = vpop.f32.mrb[0].mxu0
    %v746 = vadd.f32 0.0, %v745
    %v747 = vpop.f32.mrb[0].mxu0
    %748 = vdwg.mxu0
    %v750 = vsel %vm252, %v651, 0
    %v753 = vsel %vm252, %v654, 0
    %755 = vmatprep.subr.bf16.mxu0 0
    %756 = vmatpush1.bf16.xpose.msra.mxu0 %v753
    %757 = vmatprep.subr.bf16.mxu0 0
    %758 = vmatpush1.bf16.xpose.msra.mxu0 0
    %759 = vmatprep.subr.bf16.mxu0 0
    %760 = vmatpush1.bf16.xpose.msra.mxu0 0
    %761 = vmatprep.subr.bf16.mxu0 0
    %762 = vmatpush1.bf16.xpose.msra.mxu0 0
    %763 = vmatprep.subr.bf16.mxu0 0
    %764 = vmatpush1.bf16.xpose.msra.mxu0 0
    %765 = vmatprep.subr.bf16.mxu0 0
    %766 = vmatpush1.bf16.xpose.msra.mxu0 0
    %767 = vmatprep.subr.bf16.mxu0 0
    %768 = vmatpush1.bf16.xpose.msra.mxu0 0
    %769 = vmatprep.subr.bf16.mxu0 0
    %770 = vmatpush1.bf16.xpose.msra.mxu0 0
    %771 = vmatprep.subr.bf16.mxu0 0
    %772 = vmatpush1.bf16.xpose.msra.mxu0 0
    %773 = vmatprep.subr.bf16.mxu0 0
    %774 = vmatpush1.bf16.xpose.msra.mxu0 0
    %775 = vmatprep.subr.bf16.mxu0 0
    %776 = vmatpush1.bf16.xpose.msra.mxu0 0
    %777 = vmatprep.subr.bf16.mxu0 0
    %778 = vmatpush1.bf16.xpose.msra.mxu0 0
    %779 = vmatprep.subr.bf16.mxu0 0
    %780 = vmatpush1.bf16.xpose.msra.mxu0 0
    %781 = vmatprep.subr.bf16.mxu0 0
    %782 = vmatpush1.bf16.xpose.msra.mxu0 0
    %783 = vmatprep.subr.bf16.mxu0 0
    %784 = vmatpush1.bf16.xpose.msra.mxu0 0
    %785 = vmatprep.subr.bf16.mxu0 0
    %786 = vmatpush1.bf16.xpose.msra.mxu0 0
    %787 = vmatprep.mubr.bf16.mxu0 0
    %788 = vmatmul.mubr.bf16.gmra.mrb[0].mxu0 %v750
    %v789 = vpop.f32.mrb[0].mxu0
    %v790 = vadd.f32 0.0, %v789
    %v791 = vpop.f32.mrb[0].mxu0
    %v792 = vpop.f32.mrb[0].mxu0
    %v793 = vadd.f32 0.0, %v792
    %v794 = vpop.f32.mrb[0].mxu0
    %795 = vdwg.mxu0
    %796 = vst.msk [vmem:[#allocation6] sm:$0xff] %vm252, %v696
    %797 = vst.msk [vmem:[#allocation6 + $0x8] sm:$0xff] %vm252, %v699
    %798 = vst.msk [vmem:[#allocation6 + $0x10] sm:$0xff] %vm252, %v743
    %799 = vst.msk [vmem:[#allocation6 + $0x18] sm:$0xff] %vm252, %v746
    %800 = vst.msk [vmem:[#allocation6 + $0x20] sm:$0xff] %vm252, %v790
    %801 = vst.msk [vmem:[#allocation6 + $0x28] sm:$0xff] %vm252, %v793
    // Predicated region
    $region42: #{tpu_custom_call.1} parent=1 // pred_check
      _
    $region43: #{tpu_custom_call.1} parent=1 // pred_check_branch
      %803 = sbr.rel (0) target = $region45
    $region44: #{tpu_custom_call.1} parent=1 // pred_region
      %s805 = ssub.s32 256, 256
      %806 = vsyncadd [#allocation3], %s805
      %s807 = sshll.u32 [#allocation5], 4
      %s808 = int_to_ptr.vmem [resolvable:$true] %s807
      %813 = dma.vmem_to_hbm [thread:$0]  %s808, 256, %s9, [#allocation3], 128, 128, 8
    $region45: #{tpu_custom_call.1} parent=1 // pred_fallthru
      _
    // Predicated region
    $region46: #{tpu_custom_call.1} parent=1 // pred_check
      _
    $region47: #{tpu_custom_call.1} parent=1 // pred_check_branch
      %815 = sbr.rel (0) target = $region49
    $region48: #{tpu_custom_call.1} parent=1 // pred_region
      %s817 = ssub.s32 768, 768
      %818 = vsyncadd [#allocation7], %s817
      %s819 = sshll.u32 [#allocation6], 4
      %s820 = int_to_ptr.vmem [resolvable:$true] %s819
      %825 = dma.vmem_to_hbm [thread:$0]  %s820, 768, %s10, [#allocation7], 128, 128, 8
    $region49: #{tpu_custom_call.1} parent=1 // pred_fallthru
      _
    // Predicated region
    $region50: #{tpu_custom_call.1} parent=1 // pred_check
      _
    $region51: #{tpu_custom_call.1} parent=1 // pred_check_branch
      %827 = sbr.rel (0) target = $region53
    $region52: #{tpu_custom_call.1} parent=1 // pred_region
      %828 = dma.done [#allocation3], 256
    $region53: #{tpu_custom_call.1} parent=1 // pred_fallthru
      _
    // Predicated region
    $region54: #{tpu_custom_call.1} parent=1 // pred_check
      _
    $region55: #{tpu_custom_call.1} parent=1 // pred_check_branch
      %830 = sbr.rel (0) target = $region57
    $region56: #{tpu_custom_call.1} parent=1 // pred_region
      %831 = dma.done [#allocation7], 768
    $region57: #{tpu_custom_call.1} parent=1 // pred_fallthru
      _
    %832 = vsyncpa [#allocation3], 1
    %833 = vsyncpa [#allocation7], 1
    %834 = vsyncpa [#allocation4], 1

</llo_original>
